<compile_context>
chip_gen: v6e
topology: v6e:2x2x1
jax: 0.10.0
libtpu: 0.0.40
codegen_flags: <defaults>
</compile_context>

<pallas_src>
import jax
import jax.numpy as jnp
from jax.experimental import pallas as pl
from jax.experimental.pallas import tpu as pltpu


def _hbm_copy_kernel(x_hbm, o_hbm, sem):
    # One whole-tensor HBM -> HBM DMA; no VMEM staging, no vector work.
    cp = pltpu.make_async_copy(x_hbm, o_hbm, sem)
    cp.start()
    cp.wait()


def _materializing_copy(x):
    """Identity copy of `x` via a single HBM->HBM DMA (bandwidth-only)."""
    total = int(x.size)
    itemsize = jnp.dtype(x.dtype).itemsize
    return pl.pallas_call(
        _hbm_copy_kernel,
        out_shape=jax.ShapeDtypeStruct(x.shape, x.dtype),
        in_specs=[pl.BlockSpec(memory_space=pl.ANY)],
        out_specs=pl.BlockSpec(memory_space=pl.ANY),
        scratch_shapes=[pltpu.SemaphoreType.DMA(())],
        cost_estimate=pl.CostEstimate(
            flops=0,
            transcendentals=0,
            bytes_accessed=2 * total * itemsize,
        ),
    )(x)


# In "auto" mode tensors below this never take the kernel: a copy this small
# is dominated by fixed launch overhead and is free as a metadata reshape.
_AUTO_KERNEL_MIN_BYTES = 4 * 1024 * 1024


class DeFlatten:
    """JAX/Pallas equivalent of the PyTorch DeFlatten module (x.view(shape)).

    use_kernel:
      "never"  (default) -- pure jnp.reshape (metadata-only, recommended).
      "auto"             -- Pallas HBM->HBM DMA only for tensors >= 4 MiB.
      "always"           -- force the Pallas DMA path (benchmark / test only).
    """

    def __init__(self, *args, use_kernel: str = "never"):
        self.shape = tuple(args)
        self.use_kernel = use_kernel

    def __call__(self, x):
        total = int(x.size)
        nbytes = total * jnp.dtype(x.dtype).itemsize

        take_kernel = total > 0 and (
            self.use_kernel == "always"
            or (self.use_kernel == "auto" and nbytes >= _AUTO_KERNEL_MIN_BYTES)
        )
        if not take_kernel:
            # view() is metadata-only; this is the zero-byte fast path.
            return jnp.reshape(x, self.shape)

        # The DMA is shape-agnostic (src and dst share shape/dtype/layout), so
        # copy in the input's own shape and reshape the result for free.
        out = _materializing_copy(x)
        return jnp.reshape(out, self.shape)


if __name__ == "__main__":
    key = jax.random.PRNGKey(0)
    # Flat input, e.g. output of a Flatten: (B, C*H*W) = (2, 4*16*16)
    x = jax.random.normal(key, (2, 4 * 16 * 16), dtype=jnp.float32)
    expected = jnp.reshape(x, (2, 4, 16, 16))

    # Default / recommended path: metadata-only reshape (no kernel launched).
    out_fast = DeFlatten(2, 4, 16, 16)(x)
    out_fast = jax.block_until_ready(out_fast)
    assert out_fast.shape == (2, 4, 16, 16)
    assert out_fast.dtype == x.dtype
    assert bool(jnp.array_equal(out_fast, expected))

    # Forced Pallas path: exercises the HBM->HBM DMA copy kernel once.
    out_kernel = DeFlatten(2, 4, 16, 16, use_kernel="always")(x)
    out_kernel = jax.block_until_ready(out_kernel)
    assert out_kernel.shape == (2, 4, 16, 16)
    assert out_kernel.dtype == x.dtype
    assert bool(jnp.array_equal(out_kernel, expected))

    # Awkward element counts (not % 128) use the free metadata reshape path.
    x_small = jax.random.normal(key, (3, 5), dtype=jnp.float32)
    out_small = DeFlatten(5, 3)(x_small)
    out_small = jax.block_until_ready(out_small)
    assert bool(jnp.array_equal(out_small, jnp.reshape(x_small, (5, 3))))

    print("KERNEL_OK")
</pallas_src>

<mosaic_0001>
module attributes {stable_mosaic.version = 11 : i64} {
  func.func @_hbm_copy_kernel(%arg0: memref<2x1024xf32, #tpu.memory_space<any>>, %arg1: memref<2x1024xf32, #tpu.memory_space<any>>, %arg2: memref<!tpu.dma_semaphore, #tpu.memory_space<semaphore_mem>>) attributes {dimension_semantics = [], scalar_prefetch = 0 : i64, scratch_operands = 1 : i64, tpu.core_type = #tpu.core_type<tc>} {
    tpu.enqueue_dma source(%arg0 : memref<2x1024xf32, #tpu.memory_space<any>>) target(%arg1 : memref<2x1024xf32, #tpu.memory_space<any>>) target_semaphore(%arg2 : memref<!tpu.dma_semaphore, #tpu.memory_space<semaphore_mem>>)
    tpu.wait_dma2 semaphore(%arg2 : memref<!tpu.dma_semaphore, #tpu.memory_space<semaphore_mem>>) src(%arg0 : memref<2x1024xf32, #tpu.memory_space<any>>) dst(%arg1 : memref<2x1024xf32, #tpu.memory_space<any>>)
    return
  }
}

</mosaic_0001>

<llo_original>
// kernel: tpu_custom_call.1
$region0: #{tpu_custom_call.1}
  #allocation0 [shape = 'u32[]', space=smem, size = 0x4, offset = 0x4, fixed_abs, tag = 'smem constant byte address 0x4 - core index']
  #allocation1 [shape = 'u32[144,128]{1,0:T(1,128)}', space=vmem, size = 0x12000, scoped, tag = 'internal scratch']
  #allocation2 [shape = 's32[1]{0}', space=sflag, size = 0x4, scoped, tag = 'scratch operand']
  #allocation3 [shape = 's32[]', space=sflag, size = 0x4, offset = 0, fixed_abs, tag = 'sflag constant byte address 0x0 - dummy sync flag']
  #allocation4 [shape = 'u32[0]{0}', space=smem, size = 0, offset = 0, fixed_abs, tag = 'smem constant byte address 0x0 - null']
  %s0 = inlined_call_operand.hbm [shape: f32[2,1024], index: 0, kind: input, shape index: {}]
  %s1 = inlined_call_operand.hbm [shape: f32[2,1024], index: 1, kind: output, shape index: {}]
  %s2 = sld [smem:[#allocation0]]
  $region2: #{tpu_custom_call.1} parent=0
    _
  %s4 = ssub.s32 1, %s2
  %s5 = scalar_select 0, %s4, %s2
  %s7 = sshll.u32 1, 14
  %s8 = sxor.u32 4294967295, %s7
  %12 = dma.general %s0, 256, %s1, [#allocation2], 131072, [#allocation4], 0, 0
  %s13 = smul.u32 2, 1
  %s14 = smul.u32 %s13, 8
  %s15 = sshll.u32 %s14, 4
  %16 = dma.done [#allocation2], %s15
  %17 = vsyncmov [#allocation2]
  %s18 = vpop.sfrf %17
  %p19 = scmp.eq.s32.totalorder %s18, 0
  %p20 = pneg %p19
  %22 = shalt.err (%p20)

</llo_original>
